<compile_context>
chip_gen: v5e
topology: v5e:2x2
jax: 0.10.0
libtpu: 0.0.40
codegen_flags: <defaults>
</compile_context>

<pallas_src>
import functools

import jax
import jax.numpy as jnp
from jax import lax
from jax.experimental import pallas as pl
from jax.experimental.pallas import tpu as pltpu

LN_EPS = 1e-5  # PyTorch nn.LayerNorm default
_LANES = 128
_SUBLANES = 8


def _round_up(v, m):
    return (v + m - 1) // m * m


def _connector_kernel(*refs, folded):
    if folded:
        x_ref, gamma_ref, beta_ref, w_ref, b_ref, mproj_ref, o_ref = refs
    else:
        x_ref, gamma_ref, beta_ref, w_ref, b_ref, o_ref = refs
        mproj_ref = None

    # x_ref: (TM, Hf) tile; if folded, each row packs R logical rows of width H
    # along the lane axis (Hf = R*H = multiple of 128 lanes).
    x = x_ref[...].astype(jnp.float32)

    # --- LayerNorm statistics (f32) --------------------------------------
    if folded:
        # mproj = kron(I_R, ones(H,H)/H): one f32 matmul yields each logical
        # row's mean already broadcast across its own H-lane segment.
        mean_b = jnp.dot(x, mproj_ref[...],
                         preferred_element_type=jnp.float32,
                         precision=lax.Precision.HIGHEST)
        centered = x - mean_b
        var_b = jnp.dot(centered * centered, mproj_ref[...],
                        preferred_element_type=jnp.float32,
                        precision=lax.Precision.HIGHEST)
    else:
        mean_b = jnp.mean(x, axis=-1, keepdims=True)
        centered = x - mean_b
        var_b = jnp.mean(centered * centered, axis=-1, keepdims=True)

    y = centered * lax.rsqrt(var_b + LN_EPS) * gamma_ref[...] + beta_ref[...]

    # --- fn: Linear(H, H) on the MXU (bf16 inputs, f32 accumulate) --------
    # For the folded layout the weight is block-diagonal kron(I_R, W^T), so
    # every logical row sees exactly y_row @ W^T.
    z = jnp.dot(y.astype(w_ref.dtype), w_ref[...],
                preferred_element_type=jnp.float32) + b_ref[...]

    # --- dropout (eval mode -> identity) + residual (f32), cast at store --
    o_ref[...] = (x + z).astype(o_ref.dtype)


@functools.partial(jax.jit, static_argnames=("tile_m",))
def connector_forward(x, gamma, beta, w, b, tile_m=256):
    """x: (B, S, H). gamma/beta/b: (H,). w: (H, H) pre-transposed (y @ w)."""
    B, S, H = x.shape
    rows = B * S

    # Lane-dense folding: pack R logical rows per 128-lane row when H < 128.
    if H < _LANES and _LANES % H == 0:
        R = _LANES // H
    else:
        R = 1
    Hf = R * H
    folded = R > 1

    folded_rows = pl.cdiv(rows, R)
    tm = min(tile_m, _round_up(folded_rows, _SUBLANES))
    tm = _round_up(tm, _SUBLANES)
    folded_rows_p = _round_up(folded_rows, tm)
    rows_p = folded_rows_p * R
    grid_m = folded_rows_p // tm

    # --- operand prep (wrapper-side layout plumbing) -----------------------
    x2 = x.reshape(rows, H)
    if rows_p != rows:
        x2 = jnp.pad(x2, ((0, rows_p - rows), (0, 0)))  # ragged tail -> zeros
    xf = x2.reshape(folded_rows_p, Hf)

    gamma_f = jnp.tile(gamma.reshape(1, H).astype(jnp.float32), (1, R))
    beta_f = jnp.tile(beta.reshape(1, H).astype(jnp.float32), (1, R))
    b_f = jnp.tile(b.reshape(1, H).astype(jnp.float32), (1, R))
    eye_r = jnp.eye(R, dtype=jnp.float32)
    w_f = jnp.kron(eye_r, w.astype(jnp.float32)).astype(jnp.bfloat16)  # (Hf,Hf)

    operands = [xf, gamma_f, beta_f, w_f, b_f]
    in_specs = [
        pl.BlockSpec((tm, Hf), lambda i: (i, 0)),   # x tile (lane-dense)
        pl.BlockSpec((1, Hf), lambda i: (0, 0)),    # gamma (grid-invariant)
        pl.BlockSpec((1, Hf), lambda i: (0, 0)),    # beta
        pl.BlockSpec((Hf, Hf), lambda i: (0, 0)),   # bf16 (block-diag) weight
        pl.BlockSpec((1, Hf), lambda i: (0, 0)),    # bias
    ]
    if folded:
        mproj = jnp.kron(eye_r, jnp.full((H, H), 1.0 / H, dtype=jnp.float32))
        operands.append(mproj)
        in_specs.append(pl.BlockSpec((Hf, Hf), lambda i: (0, 0)))

    # --- VMEM budget (double-buffered tiles + resident operands) ----------
    est = (
        2 * 2 * tm * Hf * 4            # x + out tiles, double-buffered, f32
        + 2 * Hf * Hf * 2              # bf16 weight (double-buffered)
        + 2 * 3 * Hf * 4               # gamma / beta / bias
        + (2 * Hf * Hf * 4 if folded else 0)   # mean-projection matrix
    )
    vmem_limit = int(min(max(2 * est, 16 * 1024 * 1024), 64 * 1024 * 1024))

    out_f = pl.pallas_call(
        functools.partial(_connector_kernel, folded=folded),
        out_shape=jax.ShapeDtypeStruct((folded_rows_p, Hf), x.dtype),
        grid_spec=pltpu.PrefetchScalarGridSpec(
            num_scalar_prefetch=0,
            grid=(grid_m,),
            in_specs=in_specs,
            out_specs=pl.BlockSpec((tm, Hf), lambda i: (i, 0)),
        ),
        compiler_params=pltpu.CompilerParams(
            dimension_semantics=("parallel",),
            vmem_limit_bytes=vmem_limit,
        ),
    )(*operands)

    out2 = out_f.reshape(rows_p, H)[:rows]
    return out2.reshape(B, S, H)


def reference_forward(x, gamma, beta, w, b):
    """Pure-JAX f32 reference: x + Linear(LayerNorm(x))  (dropout = identity)."""
    mean = jnp.mean(x, axis=-1, keepdims=True)
    var = jnp.mean((x - mean) ** 2, axis=-1, keepdims=True)
    y = (x - mean) * lax.rsqrt(var + LN_EPS) * gamma + beta
    z = y @ w + b
    return x + z


if __name__ == "__main__":
    # Small shapes implied by the module: (batch, seq, hidden)
    B, S, H = 2, 8, 32
    key = jax.random.PRNGKey(0)
    kx, kw, kb = jax.random.split(key, 3)

    x = jax.random.normal(kx, (B, S, H), dtype=jnp.float32)

    # LayerNorm params (PyTorch init: gamma=1, beta=0)
    gamma = jnp.ones((H,), dtype=jnp.float32)
    beta = jnp.zeros((H,), dtype=jnp.float32)

    # fn = Linear(H, H); deterministic init. Store W^T so kernel does y @ w.
    w_t = jax.random.normal(kw, (H, H), dtype=jnp.float32) / jnp.sqrt(H)
    bias = jax.random.normal(kb, (H,), dtype=jnp.float32) * 0.01

    out = connector_forward(x, gamma, beta, w_t, bias)
    out = jax.block_until_ready(out)

    ref = reference_forward(x, gamma, beta, w_t, bias)
    assert out.shape == (B, S, H)
    # Tolerance loosened vs. the pure-f32 version because the Linear runs on
    # the bf16 MXU path (f32 accumulation); LN stats and residual stay f32.
    assert jnp.allclose(out, ref, atol=5e-2, rtol=5e-2), "mismatch vs reference"

    print("KERNEL_OK")
</pallas_src>

<mosaic_0001>
module attributes {stable_mosaic.version = 11 : i64} {
  func.func @_connector_kernel(%arg0: i32, %arg1: memref<8x128xf32, #tpu.memory_space<vmem>>, %arg2: memref<1x128xf32, #tpu.memory_space<vmem>>, %arg3: memref<1x128xf32, #tpu.memory_space<vmem>>, %arg4: memref<128x128xbf16, #tpu.memory_space<vmem>>, %arg5: memref<1x128xf32, #tpu.memory_space<vmem>>, %arg6: memref<128x128xf32, #tpu.memory_space<vmem>>, %arg7: memref<8x128xf32, #tpu.memory_space<vmem>>) attributes {dimension_semantics = [#tpu.dimension_semantics<parallel>], iteration_bounds = array<i64: 1>, scalar_prefetch = 0 : i64, scratch_operands = 0 : i64, tpu.core_type = #tpu.core_type<tc>, window_params = [{transform_indices = @transform_0, window_bounds = array<i64: 8, 128>}, {pipeline_mode = #tpu.pipeline_mode<synchronous>, transform_indices = @transform_1, window_bounds = array<i64: 1, 128>}, {pipeline_mode = #tpu.pipeline_mode<synchronous>, transform_indices = @transform_2, window_bounds = array<i64: 1, 128>}, {pipeline_mode = #tpu.pipeline_mode<synchronous>, transform_indices = @transform_3, window_bounds = array<i64: 128, 128>}, {pipeline_mode = #tpu.pipeline_mode<synchronous>, transform_indices = @transform_4, window_bounds = array<i64: 1, 128>}, {pipeline_mode = #tpu.pipeline_mode<synchronous>, transform_indices = @transform_5, window_bounds = array<i64: 128, 128>}, {transform_indices = @transform_6, window_bounds = array<i64: 8, 128>}]} {
    %c0 = arith.constant 0 : index
    %c0_0 = arith.constant 0 : index
    %0 = vector.load %arg1[%c0, %c0_0] : memref<8x128xf32, #tpu.memory_space<vmem>>, vector<8x128xf32>
    %c0_1 = arith.constant 0 : index
    %c0_2 = arith.constant 0 : index
    %1 = vector.load %arg6[%c0_1, %c0_2] : memref<128x128xf32, #tpu.memory_space<vmem>>, vector<128x128xf32>
    %cst = arith.constant dense<0.000000e+00> : vector<8x128xf32>
    %2 = tpu.matmul %0, %1, %cst {dimension_numbers = #tpu.dot_dimension_numbers<[1], [0], [0], [1], [0, 0, 1, 1], [], []>, precision = #tpu.contract_precision<fp32>} : vector<8x128xf32>, vector<128x128xf32>, vector<8x128xf32> -> vector<8x128xf32>
    %3 = arith.subf %0, %2 : vector<8x128xf32>
    %4 = arith.mulf %3, %3 : vector<8x128xf32>
    %c0_3 = arith.constant 0 : index
    %c0_4 = arith.constant 0 : index
    %5 = vector.load %arg6[%c0_3, %c0_4] : memref<128x128xf32, #tpu.memory_space<vmem>>, vector<128x128xf32>
    %cst_5 = arith.constant dense<0.000000e+00> : vector<8x128xf32>
    %6 = tpu.matmul %4, %5, %cst_5 {dimension_numbers = #tpu.dot_dimension_numbers<[1], [0], [0], [1], [0, 0, 1, 1], [], []>, precision = #tpu.contract_precision<fp32>} : vector<8x128xf32>, vector<128x128xf32>, vector<8x128xf32> -> vector<8x128xf32>
    %cst_6 = arith.constant 9.99999974E-6 : f32
    %7 = vector.broadcast %cst_6 : f32 to vector<8x128xf32>
    %8 = arith.addf %6, %7 : vector<8x128xf32>
    %9 = math.rsqrt %8 : vector<8x128xf32>
    %10 = arith.mulf %3, %9 : vector<8x128xf32>
    %c0_7 = arith.constant 0 : index
    %c0_8 = arith.constant 0 : index
    %11 = vector.load %arg2[%c0_7, %c0_8] : memref<1x128xf32, #tpu.memory_space<vmem>>, vector<1x128xf32>
    %12 = vector.broadcast %11 : vector<1x128xf32> to vector<8x128xf32>
    %13 = arith.mulf %10, %12 : vector<8x128xf32>
    %c0_9 = arith.constant 0 : index
    %c0_10 = arith.constant 0 : index
    %14 = vector.load %arg3[%c0_9, %c0_10] : memref<1x128xf32, #tpu.memory_space<vmem>>, vector<1x128xf32>
    %15 = vector.broadcast %14 : vector<1x128xf32> to vector<8x128xf32>
    %16 = arith.addf %13, %15 : vector<8x128xf32>
    %17 = arith.truncf %16 : vector<8x128xf32> to vector<8x128xbf16>
    %c0_11 = arith.constant 0 : index
    %c0_12 = arith.constant 0 : index
    %18 = vector.load %arg4[%c0_11, %c0_12] : memref<128x128xbf16, #tpu.memory_space<vmem>>, vector<128x128xbf16>
    %cst_13 = arith.constant dense<0.000000e+00> : vector<8x128xf32>
    %19 = tpu.matmul %17, %18, %cst_13 {dimension_numbers = #tpu.dot_dimension_numbers<[1], [0], [0], [1], [0, 0, 1, 1], [], []>} : vector<8x128xbf16>, vector<128x128xbf16>, vector<8x128xf32> -> vector<8x128xf32>
    %c0_14 = arith.constant 0 : index
    %c0_15 = arith.constant 0 : index
    %20 = vector.load %arg5[%c0_14, %c0_15] : memref<1x128xf32, #tpu.memory_space<vmem>>, vector<1x128xf32>
    %21 = vector.broadcast %20 : vector<1x128xf32> to vector<8x128xf32>
    %22 = arith.addf %19, %21 : vector<8x128xf32>
    %23 = arith.addf %0, %22 : vector<8x128xf32>
    %c0_16 = arith.constant 0 : index
    %c0_17 = arith.constant 0 : index
    %24 = vector.load %arg7[%c0_16, %c0_17] : memref<8x128xf32, #tpu.memory_space<vmem>>, vector<8x128xf32>
    tpu.vector_store %arg7[%c0_16, %c0_17], %23 {strides = array<i32>} : memref<8x128xf32, #tpu.memory_space<vmem>>, vector<8x128xf32>,
    return
  }
  func.func @transform_0(%arg0: i32) -> (i32, i32) {
    %c0_i32 = arith.constant 0 : i32
    %c0_i32_0 = arith.constant 0 : i32
    return %arg0, %c0_i32 : i32, i32
  }
  func.func @transform_1(%arg0: i32) -> (i32, i32) {
    %c0_i32 = arith.constant 0 : i32
    %c0_i32_0 = arith.constant 0 : i32
    %c0_i32_1 = arith.constant 0 : i32
    return %c0_i32, %c0_i32_0 : i32, i32
  }
  func.func @transform_2(%arg0: i32) -> (i32, i32) {
    %c0_i32 = arith.constant 0 : i32
    %c0_i32_0 = arith.constant 0 : i32
    %c0_i32_1 = arith.constant 0 : i32
    return %c0_i32, %c0_i32_0 : i32, i32
  }
  func.func @transform_3(%arg0: i32) -> (i32, i32) {
    %c0_i32 = arith.constant 0 : i32
    %c0_i32_0 = arith.constant 0 : i32
    %c0_i32_1 = arith.constant 0 : i32
    return %c0_i32, %c0_i32_0 : i32, i32
  }
  func.func @transform_4(%arg0: i32) -> (i32, i32) {
    %c0_i32 = arith.constant 0 : i32
    %c0_i32_0 = arith.constant 0 : i32
    %c0_i32_1 = arith.constant 0 : i32
    return %c0_i32, %c0_i32_0 : i32, i32
  }
  func.func @transform_5(%arg0: i32) -> (i32, i32) {
    %c0_i32 = arith.constant 0 : i32
    %c0_i32_0 = arith.constant 0 : i32
    %c0_i32_1 = arith.constant 0 : i32
    return %c0_i32, %c0_i32_0 : i32, i32
  }
  func.func @transform_6(%arg0: i32) -> (i32, i32) {
    %c0_i32 = arith.constant 0 : i32
    %c0_i32_0 = arith.constant 0 : i32
    return %arg0, %c0_i32 : i32, i32
  }
}

</mosaic_0001>

<llo_original>
// kernel: connector_forward.1
$region0: #{connector_forward.1}
  #allocation0 [shape = 'u32[]', space=smem, size = 0x4, offset = 0x4, fixed_abs, tag = 'smem constant byte address 0x4 - core index']
  #allocation1 [shape = 'u32[72,128]{1,0:T(1,128)}', space=vmem, size = 0x9000, scoped, tag = 'internal scratch']
  %s0 = inlined_call_operand.vmem [shape: f32[8,128], index: 0, kind: input, shape index: {}]
  %s1 = inlined_call_operand.vmem [shape: f32[1,128], index: 1, kind: input, shape index: {}]
  %s2 = inlined_call_operand.vmem [shape: f32[1,128], index: 2, kind: input, shape index: {}]
  %s3 = inlined_call_operand.vmem [shape: bf16[128,128], index: 3, kind: input, shape index: {}]
  %s4 = inlined_call_operand.vmem [shape: f32[1,128], index: 4, kind: input, shape index: {}]
  %s5 = inlined_call_operand.vmem [shape: f32[128,128], index: 5, kind: input, shape index: {}]
  %s6 = inlined_call_operand.vmem [shape: f32[8,128], index: 6, kind: output, shape index: {}]
  %s7 = sld [smem:[#allocation0]]
  $region34: #{connector_forward.1} parent=0
    _
  %s9 = ssub.s32 1, %s7
  %s10 = scalar_select 0, %s9, %s7
  // Predicated region
  $region2: #{connector_forward.1} parent=0 // pred_check
    _
  $region3: #{connector_forward.1} parent=0 // pred_check_branch
    %12 = sbr.rel (0) target = $region5
  $region4: #{connector_forward.1} parent=0 // pred_region
    _
  $region5: #{connector_forward.1} parent=0 // pred_fallthru
    _
  // Predicated region
  $region6: #{connector_forward.1} parent=0 // pred_check
    _
  $region7: #{connector_forward.1} parent=0 // pred_check_branch
    %14 = sbr.rel (0) target = $region9
  $region8: #{connector_forward.1} parent=0 // pred_region
    _
  $region9: #{connector_forward.1} parent=0 // pred_fallthru
    _
  // Predicated region
  $region10: #{connector_forward.1} parent=0 // pred_check
    _
  $region11: #{connector_forward.1} parent=0 // pred_check_branch
    %16 = sbr.rel (0) target = $region13
  $region12: #{connector_forward.1} parent=0 // pred_region
    _
  $region13: #{connector_forward.1} parent=0 // pred_fallthru
    _
  // Predicated region
  $region14: #{connector_forward.1} parent=0 // pred_check
    _
  $region15: #{connector_forward.1} parent=0 // pred_check_branch
    %18 = sbr.rel (0) target = $region17
  $region16: #{connector_forward.1} parent=0 // pred_region
    _
  $region17: #{connector_forward.1} parent=0 // pred_fallthru
    _
  // Predicated region
  $region18: #{connector_forward.1} parent=0 // pred_check
    _
  $region19: #{connector_forward.1} parent=0 // pred_check_branch
    %20 = sbr.rel (0) target = $region21
  $region20: #{connector_forward.1} parent=0 // pred_region
    _
  $region21: #{connector_forward.1} parent=0 // pred_fallthru
    _
  // Predicated region
  $region22: #{connector_forward.1} parent=0 // pred_check
    _
  $region23: #{connector_forward.1} parent=0 // pred_check_branch
    %22 = sbr.rel (0) target = $region25
  $region24: #{connector_forward.1} parent=0 // pred_region
    _
  $region25: #{connector_forward.1} parent=0 // pred_fallthru
    _
  %v23 = vld [vmem:[%s0] sm:$0xff]
  %v24 = vld [vmem:[%s5] sm:$0xff]
  %v25 = vld [vmem:[%s5 + $0x8] sm:$0xff]
  %v26 = vld [vmem:[%s5 + $0x10] sm:$0xff]
  %v27 = vld [vmem:[%s5 + $0x18] sm:$0xff]
  %v28 = vld [vmem:[%s5 + $0x20] sm:$0xff]
  %v29 = vld [vmem:[%s5 + $0x28] sm:$0xff]
  %v30 = vld [vmem:[%s5 + $0x30] sm:$0xff]
  %v31 = vld [vmem:[%s5 + $0x38] sm:$0xff]
  %v32 = vld [vmem:[%s5 + $0x40] sm:$0xff]
  %v33 = vld [vmem:[%s5 + $0x48] sm:$0xff]
  %v34 = vld [vmem:[%s5 + $0x50] sm:$0xff]
  %v35 = vld [vmem:[%s5 + $0x58] sm:$0xff]
  %v36 = vld [vmem:[%s5 + $0x60] sm:$0xff]
  %v37 = vld [vmem:[%s5 + $0x68] sm:$0xff]
  %v38 = vld [vmem:[%s5 + $0x70] sm:$0xff]
  %v39 = vld [vmem:[%s5 + $0x78] sm:$0xff]
  %v40 = vand.u32 %v39, 4294901760
  %41 = vmatpush.msra.mxu0 %v40
  %v42 = vand.u32 %v38, 4294901760
  %43 = vmatpush.msra.mxu0 %v42
  %v44 = vand.u32 %v37, 4294901760
  %45 = vmatpush.msra.mxu0 %v44
  %v46 = vand.u32 %v36, 4294901760
  %47 = vmatpush.msra.mxu0 %v46
  %v48 = vand.u32 %v35, 4294901760
  %49 = vmatpush.msra.mxu0 %v48
  %v50 = vand.u32 %v34, 4294901760
  %51 = vmatpush.msra.mxu0 %v50
  %v52 = vand.u32 %v33, 4294901760
  %53 = vmatpush.msra.mxu0 %v52
  %v54 = vand.u32 %v32, 4294901760
  %55 = vmatpush.msra.mxu0 %v54
  %v56 = vand.u32 %v31, 4294901760
  %57 = vmatpush.msra.mxu0 %v56
  %v58 = vand.u32 %v30, 4294901760
  %59 = vmatpush.msra.mxu0 %v58
  %v60 = vand.u32 %v29, 4294901760
  %61 = vmatpush.msra.mxu0 %v60
  %v62 = vand.u32 %v28, 4294901760
  %63 = vmatpush.msra.mxu0 %v62
  %v64 = vand.u32 %v27, 4294901760
  %65 = vmatpush.msra.mxu0 %v64
  %v66 = vand.u32 %v26, 4294901760
  %67 = vmatpush.msra.mxu0 %v66
  %v68 = vand.u32 %v25, 4294901760
  %69 = vmatpush.msra.mxu0 %v68
  %v70 = vand.u32 %v24, 4294901760
  %71 = vmatpush.msra.mxu0 %v70
  %v72 = vand.u32 %v23, 4294901760
  %v73 = vsub.f32 %v23, %v72
  %v74 = vand.u32 %v73, 4294901760
  %v75 = vsub.f32 %v73, %v74
  %v76 = vand.u32 %v75, 4294901760
  %77 = vmatmul.f32.gmra.mxu0 %v76
  %v78 = vpop.f32.mrf.mxu0
  %v79 = vadd.f32 0.0, %v78
  %80 = vdwg.mxu0
  %v81 = vand.u32 %v39, 4294901760
  %v82 = vsub.f32 %v39, %v81
  %v83 = vand.u32 %v82, 4294901760
  %v84 = vsub.f32 %v82, %v83
  %v85 = vand.u32 %v84, 4294901760
  %86 = vmatpush.msra.mxu0 %v85
  %v87 = vand.u32 %v38, 4294901760
  %v88 = vsub.f32 %v38, %v87
  %v89 = vand.u32 %v88, 4294901760
  %v90 = vsub.f32 %v88, %v89
  %v91 = vand.u32 %v90, 4294901760
  %92 = vmatpush.msra.mxu0 %v91
  %v93 = vand.u32 %v37, 4294901760
  %v94 = vsub.f32 %v37, %v93
  %v95 = vand.u32 %v94, 4294901760
  %v96 = vsub.f32 %v94, %v95
  %v97 = vand.u32 %v96, 4294901760
  %98 = vmatpush.msra.mxu0 %v97
  %v99 = vand.u32 %v36, 4294901760
  %v100 = vsub.f32 %v36, %v99
  %v101 = vand.u32 %v100, 4294901760
  %v102 = vsub.f32 %v100, %v101
  %v103 = vand.u32 %v102, 4294901760
  %104 = vmatpush.msra.mxu0 %v103
  %v105 = vand.u32 %v35, 4294901760
  %v106 = vsub.f32 %v35, %v105
  %v107 = vand.u32 %v106, 4294901760
  %v108 = vsub.f32 %v106, %v107
  %v109 = vand.u32 %v108, 4294901760
  %110 = vmatpush.msra.mxu0 %v109
  %v111 = vand.u32 %v34, 4294901760
  %v112 = vsub.f32 %v34, %v111
  %v113 = vand.u32 %v112, 4294901760
  %v114 = vsub.f32 %v112, %v113
  %v115 = vand.u32 %v114, 4294901760
  %116 = vmatpush.msra.mxu0 %v115
  %v117 = vand.u32 %v33, 4294901760
  %v118 = vsub.f32 %v33, %v117
  %v119 = vand.u32 %v118, 4294901760
  %v120 = vsub.f32 %v118, %v119
  %v121 = vand.u32 %v120, 4294901760
  %122 = vmatpush.msra.mxu0 %v121
  %v123 = vand.u32 %v32, 4294901760
  %v124 = vsub.f32 %v32, %v123
  %v125 = vand.u32 %v124, 4294901760
  %v126 = vsub.f32 %v124, %v125
  %v127 = vand.u32 %v126, 4294901760
  %128 = vmatpush.msra.mxu0 %v127
  %v129 = vand.u32 %v31, 4294901760
  %v130 = vsub.f32 %v31, %v129
  %v131 = vand.u32 %v130, 4294901760
  %v132 = vsub.f32 %v130, %v131
  %v133 = vand.u32 %v132, 4294901760
  %134 = vmatpush.msra.mxu0 %v133
  %v135 = vand.u32 %v30, 4294901760
  %v136 = vsub.f32 %v30, %v135
  %v137 = vand.u32 %v136, 4294901760
  %v138 = vsub.f32 %v136, %v137
  %v139 = vand.u32 %v138, 4294901760
  %140 = vmatpush.msra.mxu0 %v139
  %v141 = vand.u32 %v29, 4294901760
  %v142 = vsub.f32 %v29, %v141
  %v143 = vand.u32 %v142, 4294901760
  %v144 = vsub.f32 %v142, %v143
  %v145 = vand.u32 %v144, 4294901760
  %146 = vmatpush.msra.mxu0 %v145
  %v147 = vand.u32 %v28, 4294901760
  %v148 = vsub.f32 %v28, %v147
  %v149 = vand.u32 %v148, 4294901760
  %v150 = vsub.f32 %v148, %v149
  %v151 = vand.u32 %v150, 4294901760
  %152 = vmatpush.msra.mxu0 %v151
  %v153 = vand.u32 %v27, 4294901760
  %v154 = vsub.f32 %v27, %v153
  %v155 = vand.u32 %v154, 4294901760
  %v156 = vsub.f32 %v154, %v155
  %v157 = vand.u32 %v156, 4294901760
  %158 = vmatpush.msra.mxu0 %v157
  %v159 = vand.u32 %v26, 4294901760
  %v160 = vsub.f32 %v26, %v159
  %v161 = vand.u32 %v160, 4294901760
  %v162 = vsub.f32 %v160, %v161
  %v163 = vand.u32 %v162, 4294901760
  %164 = vmatpush.msra.mxu0 %v163
  %v165 = vand.u32 %v25, 4294901760
  %v166 = vsub.f32 %v25, %v165
  %v167 = vand.u32 %v166, 4294901760
  %v168 = vsub.f32 %v166, %v167
  %v169 = vand.u32 %v168, 4294901760
  %170 = vmatpush.msra.mxu0 %v169
  %v171 = vand.u32 %v24, 4294901760
  %v172 = vsub.f32 %v24, %v171
  %v173 = vand.u32 %v172, 4294901760
  %v174 = vsub.f32 %v172, %v173
  %v175 = vand.u32 %v174, 4294901760
  %176 = vmatpush.msra.mxu0 %v175
  %v177 = vand.u32 %v23, 4294901760
  %178 = vmatmul.f32.gmra.mxu0 %v177
  %v179 = vpop.f32.mrf.mxu0
  %v180 = vadd.f32 %v79, %v179
  %181 = vdwg.mxu0
  %v182 = vand.u32 %v39, 4294901760
  %v183 = vsub.f32 %v39, %v182
  %184 = vmatpush.msra.mxu0 %v183
  %v185 = vand.u32 %v38, 4294901760
  %v186 = vsub.f32 %v38, %v185
  %187 = vmatpush.msra.mxu0 %v186
  %v188 = vand.u32 %v37, 4294901760
  %v189 = vsub.f32 %v37, %v188
  %190 = vmatpush.msra.mxu0 %v189
  %v191 = vand.u32 %v36, 4294901760
  %v192 = vsub.f32 %v36, %v191
  %193 = vmatpush.msra.mxu0 %v192
  %v194 = vand.u32 %v35, 4294901760
  %v195 = vsub.f32 %v35, %v194
  %196 = vmatpush.msra.mxu0 %v195
  %v197 = vand.u32 %v34, 4294901760
  %v198 = vsub.f32 %v34, %v197
  %199 = vmatpush.msra.mxu0 %v198
  %v200 = vand.u32 %v33, 4294901760
  %v201 = vsub.f32 %v33, %v200
  %202 = vmatpush.msra.mxu0 %v201
  %v203 = vand.u32 %v32, 4294901760
  %v204 = vsub.f32 %v32, %v203
  %205 = vmatpush.msra.mxu0 %v204
  %v206 = vand.u32 %v31, 4294901760
  %v207 = vsub.f32 %v31, %v206
  %208 = vmatpush.msra.mxu0 %v207
  %v209 = vand.u32 %v30, 4294901760
  %v210 = vsub.f32 %v30, %v209
  %211 = vmatpush.msra.mxu0 %v210
  %v212 = vand.u32 %v29, 4294901760
  %v213 = vsub.f32 %v29, %v212
  %214 = vmatpush.msra.mxu0 %v213
  %v215 = vand.u32 %v28, 4294901760
  %v216 = vsub.f32 %v28, %v215
  %217 = vmatpush.msra.mxu0 %v216
  %v218 = vand.u32 %v27, 4294901760
  %v219 = vsub.f32 %v27, %v218
  %220 = vmatpush.msra.mxu0 %v219
  %v221 = vand.u32 %v26, 4294901760
  %v222 = vsub.f32 %v26, %v221
  %223 = vmatpush.msra.mxu0 %v222
  %v224 = vand.u32 %v25, 4294901760
  %v225 = vsub.f32 %v25, %v224
  %226 = vmatpush.msra.mxu0 %v225
  %v227 = vand.u32 %v24, 4294901760
  %v228 = vsub.f32 %v24, %v227
  %229 = vmatpush.msra.mxu0 %v228
  %v230 = vand.u32 %v23, 4294901760
  %v231 = vsub.f32 %v23, %v230
  %232 = vmatmul.f32.gmra.mxu0 %v231
  %v233 = vpop.f32.mrf.mxu0
  %v234 = vadd.f32 %v180, %v233
  %235 = vdwg.mxu0
  %v236 = vand.u32 %v39, 4294901760
  %237 = vmatpush.msra.mxu0 %v236
  %v238 = vand.u32 %v38, 4294901760
  %239 = vmatpush.msra.mxu0 %v238
  %v240 = vand.u32 %v37, 4294901760
  %241 = vmatpush.msra.mxu0 %v240
  %v242 = vand.u32 %v36, 4294901760
  %243 = vmatpush.msra.mxu0 %v242
  %v244 = vand.u32 %v35, 4294901760
  %245 = vmatpush.msra.mxu0 %v244
  %v246 = vand.u32 %v34, 4294901760
  %247 = vmatpush.msra.mxu0 %v246
  %v248 = vand.u32 %v33, 4294901760
  %249 = vmatpush.msra.mxu0 %v248
  %v250 = vand.u32 %v32, 4294901760
  %251 = vmatpush.msra.mxu0 %v250
  %v252 = vand.u32 %v31, 4294901760
  %253 = vmatpush.msra.mxu0 %v252
  %v254 = vand.u32 %v30, 4294901760
  %255 = vmatpush.msra.mxu0 %v254
  %v256 = vand.u32 %v29, 4294901760
  %257 = vmatpush.msra.mxu0 %v256
  %v258 = vand.u32 %v28, 4294901760
  %259 = vmatpush.msra.mxu0 %v258
  %v260 = vand.u32 %v27, 4294901760
  %261 = vmatpush.msra.mxu0 %v260
  %v262 = vand.u32 %v26, 4294901760
  %263 = vmatpush.msra.mxu0 %v262
  %v264 = vand.u32 %v25, 4294901760
  %265 = vmatpush.msra.mxu0 %v264
  %v266 = vand.u32 %v24, 4294901760
  %267 = vmatpush.msra.mxu0 %v266
  %v268 = vand.u32 %v23, 4294901760
  %v269 = vsub.f32 %v23, %v268
  %v270 = vand.u32 %v269, 4294901760
  %271 = vmatmul.f32.gmra.mxu0 %v270
  %v272 = vpop.f32.mrf.mxu0
  %v273 = vadd.f32 %v234, %v272
  %274 = vdwg.mxu0
  %v275 = vand.u32 %v39, 4294901760
  %v276 = vsub.f32 %v39, %v275
  %v277 = vand.u32 %v276, 4294901760
  %278 = vmatpush.msra.mxu0 %v277
  %v279 = vand.u32 %v38, 4294901760
  %v280 = vsub.f32 %v38, %v279
  %v281 = vand.u32 %v280, 4294901760
  %282 = vmatpush.msra.mxu0 %v281
  %v283 = vand.u32 %v37, 4294901760
  %v284 = vsub.f32 %v37, %v283
  %v285 = vand.u32 %v284, 4294901760
  %286 = vmatpush.msra.mxu0 %v285
  %v287 = vand.u32 %v36, 4294901760
  %v288 = vsub.f32 %v36, %v287
  %v289 = vand.u32 %v288, 4294901760
  %290 = vmatpush.msra.mxu0 %v289
  %v291 = vand.u32 %v35, 4294901760
  %v292 = vsub.f32 %v35, %v291
  %v293 = vand.u32 %v292, 4294901760
  %294 = vmatpush.msra.mxu0 %v293
  %v295 = vand.u32 %v34, 4294901760
  %v296 = vsub.f32 %v34, %v295
  %v297 = vand.u32 %v296, 4294901760
  %298 = vmatpush.msra.mxu0 %v297
  %v299 = vand.u32 %v33, 4294901760
  %v300 = vsub.f32 %v33, %v299
  %v301 = vand.u32 %v300, 4294901760
  %302 = vmatpush.msra.mxu0 %v301
  %v303 = vand.u32 %v32, 4294901760
  %v304 = vsub.f32 %v32, %v303
  %v305 = vand.u32 %v304, 4294901760
  %306 = vmatpush.msra.mxu0 %v305
  %v307 = vand.u32 %v31, 4294901760
  %v308 = vsub.f32 %v31, %v307
  %v309 = vand.u32 %v308, 4294901760
  %310 = vmatpush.msra.mxu0 %v309
  %v311 = vand.u32 %v30, 4294901760
  %v312 = vsub.f32 %v30, %v311
  %v313 = vand.u32 %v312, 4294901760
  %314 = vmatpush.msra.mxu0 %v313
  %v315 = vand.u32 %v29, 4294901760
  %v316 = vsub.f32 %v29, %v315
  %v317 = vand.u32 %v316, 4294901760
  %318 = vmatpush.msra.mxu0 %v317
  %v319 = vand.u32 %v28, 4294901760
  %v320 = vsub.f32 %v28, %v319
  %v321 = vand.u32 %v320, 4294901760
  %322 = vmatpush.msra.mxu0 %v321
  %v323 = vand.u32 %v27, 4294901760
  %v324 = vsub.f32 %v27, %v323
  %v325 = vand.u32 %v324, 4294901760
  %326 = vmatpush.msra.mxu0 %v325
  %v327 = vand.u32 %v26, 4294901760
  %v328 = vsub.f32 %v26, %v327
  %v329 = vand.u32 %v328, 4294901760
  %330 = vmatpush.msra.mxu0 %v329
  %v331 = vand.u32 %v25, 4294901760
  %v332 = vsub.f32 %v25, %v331
  %v333 = vand.u32 %v332, 4294901760
  %334 = vmatpush.msra.mxu0 %v333
  %v335 = vand.u32 %v24, 4294901760
  %v336 = vsub.f32 %v24, %v335
  %v337 = vand.u32 %v336, 4294901760
  %338 = vmatpush.msra.mxu0 %v337
  %v339 = vand.u32 %v23, 4294901760
  %340 = vmatmul.f32.gmra.mxu0 %v339
  %v341 = vpop.f32.mrf.mxu0
  %v342 = vadd.f32 %v273, %v341
  %343 = vdwg.mxu0
  %v344 = vand.u32 %v39, 4294901760
  %345 = vmatpush.msra.mxu0 %v344
  %v346 = vand.u32 %v38, 4294901760
  %347 = vmatpush.msra.mxu0 %v346
  %v348 = vand.u32 %v37, 4294901760
  %349 = vmatpush.msra.mxu0 %v348
  %v350 = vand.u32 %v36, 4294901760
  %351 = vmatpush.msra.mxu0 %v350
  %v352 = vand.u32 %v35, 4294901760
  %353 = vmatpush.msra.mxu0 %v352
  %v354 = vand.u32 %v34, 4294901760
  %355 = vmatpush.msra.mxu0 %v354
  %v356 = vand.u32 %v33, 4294901760
  %357 = vmatpush.msra.mxu0 %v356
  %v358 = vand.u32 %v32, 4294901760
  %359 = vmatpush.msra.mxu0 %v358
  %v360 = vand.u32 %v31, 4294901760
  %361 = vmatpush.msra.mxu0 %v360
  %v362 = vand.u32 %v30, 4294901760
  %363 = vmatpush.msra.mxu0 %v362
  %v364 = vand.u32 %v29, 4294901760
  %365 = vmatpush.msra.mxu0 %v364
  %v366 = vand.u32 %v28, 4294901760
  %367 = vmatpush.msra.mxu0 %v366
  %v368 = vand.u32 %v27, 4294901760
  %369 = vmatpush.msra.mxu0 %v368
  %v370 = vand.u32 %v26, 4294901760
  %371 = vmatpush.msra.mxu0 %v370
  %v372 = vand.u32 %v25, 4294901760
  %373 = vmatpush.msra.mxu0 %v372
  %v374 = vand.u32 %v24, 4294901760
  %375 = vmatpush.msra.mxu0 %v374
  %v376 = vand.u32 %v23, 4294901760
  %377 = vmatmul.f32.gmra.mxu0 %v376
  %v378 = vpop.f32.mrf.mxu0
  %v379 = vadd.f32 %v342, %v378
  %380 = vdwg.mxu0
  %v381 = vsub.f32 %v23, %v379
  %v382 = vmul.f32 %v381, %v381
  %v383 = vand.u32 %v39, 4294901760
  %384 = vmatpush.msra.mxu0 %v383
  %v385 = vand.u32 %v38, 4294901760
  %386 = vmatpush.msra.mxu0 %v385
  %v387 = vand.u32 %v37, 4294901760
  %388 = vmatpush.msra.mxu0 %v387
  %v389 = vand.u32 %v36, 4294901760
  %390 = vmatpush.msra.mxu0 %v389
  %v391 = vand.u32 %v35, 4294901760
  %392 = vmatpush.msra.mxu0 %v391
  %v393 = vand.u32 %v34, 4294901760
  %394 = vmatpush.msra.mxu0 %v393
  %v395 = vand.u32 %v33, 4294901760
  %396 = vmatpush.msra.mxu0 %v395
  %v397 = vand.u32 %v32, 4294901760
  %398 = vmatpush.msra.mxu0 %v397
  %v399 = vand.u32 %v31, 4294901760
  %400 = vmatpush.msra.mxu0 %v399
  %v401 = vand.u32 %v30, 4294901760
  %402 = vmatpush.msra.mxu0 %v401
  %v403 = vand.u32 %v29, 4294901760
  %404 = vmatpush.msra.mxu0 %v403
  %v405 = vand.u32 %v28, 4294901760
  %406 = vmatpush.msra.mxu0 %v405
  %v407 = vand.u32 %v27, 4294901760
  %408 = vmatpush.msra.mxu0 %v407
  %v409 = vand.u32 %v26, 4294901760
  %410 = vmatpush.msra.mxu0 %v409
  %v411 = vand.u32 %v25, 4294901760
  %412 = vmatpush.msra.mxu0 %v411
  %v413 = vand.u32 %v24, 4294901760
  %414 = vmatpush.msra.mxu0 %v413
  %v415 = vand.u32 %v382, 4294901760
  %v416 = vsub.f32 %v382, %v415
  %v417 = vand.u32 %v416, 4294901760
  %v418 = vsub.f32 %v416, %v417
  %v419 = vand.u32 %v418, 4294901760
  %420 = vmatmul.f32.gmra.mxu0 %v419
  %v421 = vpop.f32.mrf.mxu0
  %v422 = vadd.f32 1e-05, %v421
  %423 = vdwg.mxu0
  %v424 = vand.u32 %v39, 4294901760
  %v425 = vsub.f32 %v39, %v424
  %v426 = vand.u32 %v425, 4294901760
  %v427 = vsub.f32 %v425, %v426
  %v428 = vand.u32 %v427, 4294901760
  %429 = vmatpush.msra.mxu0 %v428
  %v430 = vand.u32 %v38, 4294901760
  %v431 = vsub.f32 %v38, %v430
  %v432 = vand.u32 %v431, 4294901760
  %v433 = vsub.f32 %v431, %v432
  %v434 = vand.u32 %v433, 4294901760
  %435 = vmatpush.msra.mxu0 %v434
  %v436 = vand.u32 %v37, 4294901760
  %v437 = vsub.f32 %v37, %v436
  %v438 = vand.u32 %v437, 4294901760
  %v439 = vsub.f32 %v437, %v438
  %v440 = vand.u32 %v439, 4294901760
  %441 = vmatpush.msra.mxu0 %v440
  %v442 = vand.u32 %v36, 4294901760
  %v443 = vsub.f32 %v36, %v442
  %v444 = vand.u32 %v443, 4294901760
  %v445 = vsub.f32 %v443, %v444
  %v446 = vand.u32 %v445, 4294901760
  %447 = vmatpush.msra.mxu0 %v446
  %v448 = vand.u32 %v35, 4294901760
  %v449 = vsub.f32 %v35, %v448
  %v450 = vand.u32 %v449, 4294901760
  %v451 = vsub.f32 %v449, %v450
  %v452 = vand.u32 %v451, 4294901760
  %453 = vmatpush.msra.mxu0 %v452
  %v454 = vand.u32 %v34, 4294901760
  %v455 = vsub.f32 %v34, %v454
  %v456 = vand.u32 %v455, 4294901760
  %v457 = vsub.f32 %v455, %v456
  %v458 = vand.u32 %v457, 4294901760
  %459 = vmatpush.msra.mxu0 %v458
  %v460 = vand.u32 %v33, 4294901760
  %v461 = vsub.f32 %v33, %v460
  %v462 = vand.u32 %v461, 4294901760
  %v463 = vsub.f32 %v461, %v462
  %v464 = vand.u32 %v463, 4294901760
  %465 = vmatpush.msra.mxu0 %v464
  %v466 = vand.u32 %v32, 4294901760
  %v467 = vsub.f32 %v32, %v466
  %v468 = vand.u32 %v467, 4294901760
  %v469 = vsub.f32 %v467, %v468
  %v470 = vand.u32 %v469, 4294901760
  %471 = vmatpush.msra.mxu0 %v470
  %v472 = vand.u32 %v31, 4294901760
  %v473 = vsub.f32 %v31, %v472
  %v474 = vand.u32 %v473, 4294901760
  %v475 = vsub.f32 %v473, %v474
  %v476 = vand.u32 %v475, 4294901760
  %477 = vmatpush.msra.mxu0 %v476
  %v478 = vand.u32 %v30, 4294901760
  %v479 = vsub.f32 %v30, %v478
  %v480 = vand.u32 %v479, 4294901760
  %v481 = vsub.f32 %v479, %v480
  %v482 = vand.u32 %v481, 4294901760
  %483 = vmatpush.msra.mxu0 %v482
  %v484 = vand.u32 %v29, 4294901760
  %v485 = vsub.f32 %v29, %v484
  %v486 = vand.u32 %v485, 4294901760
  %v487 = vsub.f32 %v485, %v486
  %v488 = vand.u32 %v487, 4294901760
  %489 = vmatpush.msra.mxu0 %v488
  %v490 = vand.u32 %v28, 4294901760
  %v491 = vsub.f32 %v28, %v490
  %v492 = vand.u32 %v491, 4294901760
  %v493 = vsub.f32 %v491, %v492
  %v494 = vand.u32 %v493, 4294901760
  %495 = vmatpush.msra.mxu0 %v494
  %v496 = vand.u32 %v27, 4294901760
  %v497 = vsub.f32 %v27, %v496
  %v498 = vand.u32 %v497, 4294901760
  %v499 = vsub.f32 %v497, %v498
  %v500 = vand.u32 %v499, 4294901760
  %501 = vmatpush.msra.mxu0 %v500
  %v502 = vand.u32 %v26, 4294901760
  %v503 = vsub.f32 %v26, %v502
  %v504 = vand.u32 %v503, 4294901760
  %v505 = vsub.f32 %v503, %v504
  %v506 = vand.u32 %v505, 4294901760
  %507 = vmatpush.msra.mxu0 %v506
  %v508 = vand.u32 %v25, 4294901760
  %v509 = vsub.f32 %v25, %v508
  %v510 = vand.u32 %v509, 4294901760
  %v511 = vsub.f32 %v509, %v510
  %v512 = vand.u32 %v511, 4294901760
  %513 = vmatpush.msra.mxu0 %v512
  %v514 = vand.u32 %v24, 4294901760
  %v515 = vsub.f32 %v24, %v514
  %v516 = vand.u32 %v515, 4294901760
  %v517 = vsub.f32 %v515, %v516
  %v518 = vand.u32 %v517, 4294901760
  %519 = vmatpush.msra.mxu0 %v518
  %v520 = vand.u32 %v382, 4294901760
  %521 = vmatmul.f32.gmra.mxu0 %v520
  %v522 = vpop.f32.mrf.mxu0
  %v523 = vadd.f32 %v422, %v522
  %524 = vdwg.mxu0
  %v525 = vand.u32 %v39, 4294901760
  %v526 = vsub.f32 %v39, %v525
  %527 = vmatpush.msra.mxu0 %v526
  %v528 = vand.u32 %v38, 4294901760
  %v529 = vsub.f32 %v38, %v528
  %530 = vmatpush.msra.mxu0 %v529
  %v531 = vand.u32 %v37, 4294901760
  %v532 = vsub.f32 %v37, %v531
  %533 = vmatpush.msra.mxu0 %v532
  %v534 = vand.u32 %v36, 4294901760
  %v535 = vsub.f32 %v36, %v534
  %536 = vmatpush.msra.mxu0 %v535
  %v537 = vand.u32 %v35, 4294901760
  %v538 = vsub.f32 %v35, %v537
  %539 = vmatpush.msra.mxu0 %v538
  %v540 = vand.u32 %v34, 4294901760
  %v541 = vsub.f32 %v34, %v540
  %542 = vmatpush.msra.mxu0 %v541
  %v543 = vand.u32 %v33, 4294901760
  %v544 = vsub.f32 %v33, %v543
  %545 = vmatpush.msra.mxu0 %v544
  %v546 = vand.u32 %v32, 4294901760
  %v547 = vsub.f32 %v32, %v546
  %548 = vmatpush.msra.mxu0 %v547
  %v549 = vand.u32 %v31, 4294901760
  %v550 = vsub.f32 %v31, %v549
  %551 = vmatpush.msra.mxu0 %v550
  %v552 = vand.u32 %v30, 4294901760
  %v553 = vsub.f32 %v30, %v552
  %554 = vmatpush.msra.mxu0 %v553
  %v555 = vand.u32 %v29, 4294901760
  %v556 = vsub.f32 %v29, %v555
  %557 = vmatpush.msra.mxu0 %v556
  %v558 = vand.u32 %v28, 4294901760
  %v559 = vsub.f32 %v28, %v558
  %560 = vmatpush.msra.mxu0 %v559
  %v561 = vand.u32 %v27, 4294901760
  %v562 = vsub.f32 %v27, %v561
  %563 = vmatpush.msra.mxu0 %v562
  %v564 = vand.u32 %v26, 4294901760
  %v565 = vsub.f32 %v26, %v564
  %566 = vmatpush.msra.mxu0 %v565
  %v567 = vand.u32 %v25, 4294901760
  %v568 = vsub.f32 %v25, %v567
  %569 = vmatpush.msra.mxu0 %v568
  %v570 = vand.u32 %v24, 4294901760
  %v571 = vsub.f32 %v24, %v570
  %572 = vmatpush.msra.mxu0 %v571
  %v573 = vand.u32 %v382, 4294901760
  %v574 = vsub.f32 %v382, %v573
  %575 = vmatmul.f32.gmra.mxu0 %v574
  %v576 = vpop.f32.mrf.mxu0
  %v577 = vadd.f32 %v523, %v576
  %578 = vdwg.mxu0
  %v579 = vand.u32 %v39, 4294901760
  %580 = vmatpush.msra.mxu0 %v579
  %v581 = vand.u32 %v38, 4294901760
  %582 = vmatpush.msra.mxu0 %v581
  %v583 = vand.u32 %v37, 4294901760
  %584 = vmatpush.msra.mxu0 %v583
  %v585 = vand.u32 %v36, 4294901760
  %586 = vmatpush.msra.mxu0 %v585
  %v587 = vand.u32 %v35, 4294901760
  %588 = vmatpush.msra.mxu0 %v587
  %v589 = vand.u32 %v34, 4294901760
  %590 = vmatpush.msra.mxu0 %v589
  %v591 = vand.u32 %v33, 4294901760
  %592 = vmatpush.msra.mxu0 %v591
  %v593 = vand.u32 %v32, 4294901760
  %594 = vmatpush.msra.mxu0 %v593
  %v595 = vand.u32 %v31, 4294901760
  %596 = vmatpush.msra.mxu0 %v595
  %v597 = vand.u32 %v30, 4294901760
  %598 = vmatpush.msra.mxu0 %v597
  %v599 = vand.u32 %v29, 4294901760
  %600 = vmatpush.msra.mxu0 %v599
  %v601 = vand.u32 %v28, 4294901760
  %602 = vmatpush.msra.mxu0 %v601
  %v603 = vand.u32 %v27, 4294901760
  %604 = vmatpush.msra.mxu0 %v603
  %v605 = vand.u32 %v26, 4294901760
  %606 = vmatpush.msra.mxu0 %v605
  %v607 = vand.u32 %v25, 4294901760
  %608 = vmatpush.msra.mxu0 %v607
  %v609 = vand.u32 %v24, 4294901760
  %610 = vmatpush.msra.mxu0 %v609
  %v611 = vand.u32 %v382, 4294901760
  %v612 = vsub.f32 %v382, %v611
  %v613 = vand.u32 %v612, 4294901760
  %614 = vmatmul.f32.gmra.mxu0 %v613
  %v615 = vpop.f32.mrf.mxu0
  %v616 = vadd.f32 %v577, %v615
  %617 = vdwg.mxu0
  %v618 = vand.u32 %v39, 4294901760
  %v619 = vsub.f32 %v39, %v618
  %v620 = vand.u32 %v619, 4294901760
  %621 = vmatpush.msra.mxu0 %v620
  %v622 = vand.u32 %v38, 4294901760
  %v623 = vsub.f32 %v38, %v622
  %v624 = vand.u32 %v623, 4294901760
  %625 = vmatpush.msra.mxu0 %v624
  %v626 = vand.u32 %v37, 4294901760
  %v627 = vsub.f32 %v37, %v626
  %v628 = vand.u32 %v627, 4294901760
  %629 = vmatpush.msra.mxu0 %v628
  %v630 = vand.u32 %v36, 4294901760
  %v631 = vsub.f32 %v36, %v630
  %v632 = vand.u32 %v631, 4294901760
  %633 = vmatpush.msra.mxu0 %v632
  %v634 = vand.u32 %v35, 4294901760
  %v635 = vsub.f32 %v35, %v634
  %v636 = vand.u32 %v635, 4294901760
  %637 = vmatpush.msra.mxu0 %v636
  %v638 = vand.u32 %v34, 4294901760
  %v639 = vsub.f32 %v34, %v638
  %v640 = vand.u32 %v639, 4294901760
  %641 = vmatpush.msra.mxu0 %v640
  %v642 = vand.u32 %v33, 4294901760
  %v643 = vsub.f32 %v33, %v642
  %v644 = vand.u32 %v643, 4294901760
  %645 = vmatpush.msra.mxu0 %v644
  %v646 = vand.u32 %v32, 4294901760
  %v647 = vsub.f32 %v32, %v646
  %v648 = vand.u32 %v647, 4294901760
  %649 = vmatpush.msra.mxu0 %v648
  %v650 = vand.u32 %v31, 4294901760
  %v651 = vsub.f32 %v31, %v650
  %v652 = vand.u32 %v651, 4294901760
  %653 = vmatpush.msra.mxu0 %v652
  %v654 = vand.u32 %v30, 4294901760
  %v655 = vsub.f32 %v30, %v654
  %v656 = vand.u32 %v655, 4294901760
  %657 = vmatpush.msra.mxu0 %v656
  %v658 = vand.u32 %v29, 4294901760
  %v659 = vsub.f32 %v29, %v658
  %v660 = vand.u32 %v659, 4294901760
  %661 = vmatpush.msra.mxu0 %v660
  %v662 = vand.u32 %v28, 4294901760
  %v663 = vsub.f32 %v28, %v662
  %v664 = vand.u32 %v663, 4294901760
  %665 = vmatpush.msra.mxu0 %v664
  %v666 = vand.u32 %v27, 4294901760
  %v667 = vsub.f32 %v27, %v666
  %v668 = vand.u32 %v667, 4294901760
  %669 = vmatpush.msra.mxu0 %v668
  %v670 = vand.u32 %v26, 4294901760
  %v671 = vsub.f32 %v26, %v670
  %v672 = vand.u32 %v671, 4294901760
  %673 = vmatpush.msra.mxu0 %v672
  %v674 = vand.u32 %v25, 4294901760
  %v675 = vsub.f32 %v25, %v674
  %v676 = vand.u32 %v675, 4294901760
  %677 = vmatpush.msra.mxu0 %v676
  %v678 = vand.u32 %v24, 4294901760
  %v679 = vsub.f32 %v24, %v678
  %v680 = vand.u32 %v679, 4294901760
  %681 = vmatpush.msra.mxu0 %v680
  %v682 = vand.u32 %v382, 4294901760
  %683 = vmatmul.f32.gmra.mxu0 %v682
  %v684 = vpop.f32.mrf.mxu0
  %v685 = vadd.f32 %v616, %v684
  %686 = vdwg.mxu0
  %v687 = vand.u32 %v39, 4294901760
  %688 = vmatpush.msra.mxu0 %v687
  %v689 = vand.u32 %v38, 4294901760
  %690 = vmatpush.msra.mxu0 %v689
  %v691 = vand.u32 %v37, 4294901760
  %692 = vmatpush.msra.mxu0 %v691
  %v693 = vand.u32 %v36, 4294901760
  %694 = vmatpush.msra.mxu0 %v693
  %v695 = vand.u32 %v35, 4294901760
  %696 = vmatpush.msra.mxu0 %v695
  %v697 = vand.u32 %v34, 4294901760
  %698 = vmatpush.msra.mxu0 %v697
  %v699 = vand.u32 %v33, 4294901760
  %700 = vmatpush.msra.mxu0 %v699
  %v701 = vand.u32 %v32, 4294901760
  %702 = vmatpush.msra.mxu0 %v701
  %v703 = vand.u32 %v31, 4294901760
  %704 = vmatpush.msra.mxu0 %v703
  %v705 = vand.u32 %v30, 4294901760
  %706 = vmatpush.msra.mxu0 %v705
  %v707 = vand.u32 %v29, 4294901760
  %708 = vmatpush.msra.mxu0 %v707
  %v709 = vand.u32 %v28, 4294901760
  %710 = vmatpush.msra.mxu0 %v709
  %v711 = vand.u32 %v27, 4294901760
  %712 = vmatpush.msra.mxu0 %v711
  %v713 = vand.u32 %v26, 4294901760
  %714 = vmatpush.msra.mxu0 %v713
  %v715 = vand.u32 %v25, 4294901760
  %716 = vmatpush.msra.mxu0 %v715
  %v717 = vand.u32 %v24, 4294901760
  %718 = vmatpush.msra.mxu0 %v717
  %v719 = vand.u32 %v382, 4294901760
  %720 = vmatmul.f32.gmra.mxu0 %v719
  %v721 = vpop.f32.mrf.mxu0
  %v722 = vadd.f32 %v685, %v721
  %723 = vdwg.mxu0
  %v724 = vrsqrt.pop %v722
  %v725 = vmul.f32 %v724, %v722
  %v726 = vmul.f32 %v725, %v724
  %v727 = vmul.f32 0.5, %v726
  %v728 = vsub.f32 1.5, %v727
  %v729 = vmul.f32 %v724, %v728
  %vm730 = vweird.f32 %v722
  %vm731 = vweird.f32 %v724
  %vm732 = vmor %vm730, %vm731
  %v733 = vsel %vm732, %v724, %v729
  %v734 = vmul.f32 %v381, %v733
  %v735 = vld [vmem:[%s1] sm:$0x1]
  %v737 = vperm.slane %v735, 0
  %v739 = vmul.f32 %v734, %v737
  %v740 = vld [vmem:[%s2] sm:$0x1]
  %v742 = vperm.slane %v740, 0
  %v744 = vadd.f32 %v739, %v742
  %v745 = vpack.c.bf16 %v744, %v744
  %v746 = vld [vmem:[%s3] sm:$0xf]
  %v747 = vld [vmem:[%s3 + $0x4] sm:$0xf]
  %v748 = vld [vmem:[%s3 + $0x8] sm:$0xf]
  %v749 = vld [vmem:[%s3 + $0xc] sm:$0xf]
  %v750 = vld [vmem:[%s3 + $0x10] sm:$0xf]
  %v751 = vld [vmem:[%s3 + $0x14] sm:$0xf]
  %v752 = vld [vmem:[%s3 + $0x18] sm:$0xf]
  %v753 = vld [vmem:[%s3 + $0x1c] sm:$0xf]
  %v754 = vld [vmem:[%s3 + $0x20] sm:$0xf]
  %v755 = vld [vmem:[%s3 + $0x24] sm:$0xf]
  %v756 = vld [vmem:[%s3 + $0x28] sm:$0xf]
  %v757 = vld [vmem:[%s3 + $0x2c] sm:$0xf]
  %v758 = vld [vmem:[%s3 + $0x30] sm:$0xf]
  %v759 = vld [vmem:[%s3 + $0x34] sm:$0xf]
  %v760 = vld [vmem:[%s3 + $0x38] sm:$0xf]
  %v761 = vld [vmem:[%s3 + $0x3c] sm:$0xf]
  %v762 = vld [vmem:[%s4] sm:$0x1]
  %v764 = vperm.slane %v762, 0
  %v782 = vunpack.c.l.b16 %v746
  %v783 = vunpack.c.l.b16 %v747
  %v784 = vunpack.c.l.b16 %v748
  %v785 = vunpack.c.l.b16 %v749
  %v786 = vunpack.c.l.b16 %v750
  %v787 = vunpack.c.l.b16 %v751
  %v788 = vunpack.c.l.b16 %v752
  %v789 = vunpack.c.l.b16 %v753
  %v790 = vunpack.c.l.b16 %v754
  %v791 = vunpack.c.l.b16 %v755
  %v792 = vunpack.c.l.b16 %v756
  %v793 = vunpack.c.l.b16 %v757
  %v794 = vunpack.c.l.b16 %v758
  %v795 = vunpack.c.l.b16 %v759
  %v796 = vunpack.c.l.b16 %v760
  %v797 = vunpack.c.l.b16 %v761
  %v798 = vpack.c.b16 %v783, %v782
  %v799 = vpack.c.b16 %v785, %v784
  %v800 = vpack.c.b16 %v787, %v786
  %v801 = vpack.c.b16 %v789, %v788
  %v802 = vpack.c.b16 %v791, %v790
  %v803 = vpack.c.b16 %v793, %v792
  %v804 = vpack.c.b16 %v795, %v794
  %v805 = vpack.c.b16 %v797, %v796
  %814 = vmatpush.bf16.msra.mxu0 %v805
  %815 = vmatpush.bf16.msra.mxu0 %v804
  %816 = vmatpush.bf16.msra.mxu0 %v803
  %817 = vmatpush.bf16.msra.mxu0 %v802
  %818 = vmatpush.bf16.msra.mxu0 %v801
  %819 = vmatpush.bf16.msra.mxu0 %v800
  %820 = vmatpush.bf16.msra.mxu0 %v799
  %821 = vmatpush.bf16.msra.mxu0 %v798
  %822 = vmatmul.bf16.gmra.mxu0 %v745
  %v823 = vpop.f32.mrf.mxu0
  %v824 = vadd.f32 %v764, %v823
  %v825 = vpop.f32.mrf.mxu0
  %826 = vdwg.mxu0
  %v827 = vadd.f32 %v23, %v824
  %828 = vst [vmem:[%s6] sm:$0xff] %v827
  // Predicated region
  $region26: #{connector_forward.1} parent=0 // pred_check
    _
  $region27: #{connector_forward.1} parent=0 // pred_check_branch
    %830 = sbr.rel (0) target = $region29
  $region28: #{connector_forward.1} parent=0 // pred_region
    _
  $region29: #{connector_forward.1} parent=0 // pred_fallthru
    _
  // Predicated region
  $region30: #{connector_forward.1} parent=0 // pred_check
    _
  $region31: #{connector_forward.1} parent=0 // pred_check_branch
    %832 = sbr.rel (0) target = $region33
  $region32: #{connector_forward.1} parent=0 // pred_region
    _
  $region33: #{connector_forward.1} parent=0 // pred_fallthru
    _

</llo_original>
